<compile_context>
chip_gen: v6e
topology: v6e:2x2x1
jax: 0.10.0
libtpu: 0.0.40
codegen_flags: <defaults>
</compile_context>

<pallas_src>
import math
import jax
import jax.numpy as jnp
from jax.experimental import pallas as pl
from jax.experimental.pallas import tpu as pltpu

EPS = 1e-5  # nn.LayerNorm default


def encoder_layer_kernel(
    x_ref,
    wqkv_ref, bqkv_ref,
    wo_ref, bo_ref,
    w1_ref, b1_ref,
    w2_ref, b2_ref,
    g1_ref, beta1_ref,
    g2_ref, beta2_ref,
    o_ref,
):
    bt, s, d = x_ref.shape
    rows = bt * s

    x3 = x_ref[...]                          # (Bt, S, D) f32
    x2 = x3.reshape(rows, d)                 # fold batch into matmul M dimension
    x_bf = x2.astype(jnp.bfloat16)

    # ---- fused QKV projection: one (rows, 3D) matmul, bf16 operands / f32 acc ----
    qkv = jnp.dot(x_bf, wqkv_ref[...], preferred_element_type=jnp.float32)
    qkv = qkv + bqkv_ref[...]                # (rows, 3D) f32
    q = qkv[:, :d]
    k = qkv[:, d:2 * d]
    v = qkv[:, 2 * d:]

    # ---- attention (scores stay per batch element) -------------------------------
    q3 = q.reshape(bt, s, d).astype(jnp.bfloat16)
    k3 = k.reshape(bt, s, d).astype(jnp.bfloat16)
    v3 = v.reshape(bt, s, d).astype(jnp.bfloat16)
    scale = 1.0 / math.sqrt(d)
    scores = jnp.einsum("bqd,bkd->bqk", q3, k3,
                        preferred_element_type=jnp.float32) * scale   # (Bt,S,S) f32
    m = jnp.max(scores, axis=-1, keepdims=True)
    p = jnp.exp(scores - m)
    p = p * pl.reciprocal(jnp.sum(p, axis=-1, keepdims=True), approx=True)
    attn = jnp.einsum("bqk,bkd->bqd", p.astype(jnp.bfloat16), v3,
                      preferred_element_type=jnp.float32)             # (Bt,S,D) f32

    attn2 = attn.reshape(rows, d).astype(jnp.bfloat16)
    attn_out = jnp.dot(attn2, wo_ref[...], preferred_element_type=jnp.float32)
    attn_out = attn_out + bo_ref[...]

    # ---- residual + LayerNorm 1 (dropout1 = identity in eval, f32 stats) ---------
    src = x2 + attn_out
    mu = jnp.mean(src, axis=-1, keepdims=True)
    var = jnp.mean((src - mu) ** 2, axis=-1, keepdims=True)
    src = (src - mu) * jax.lax.rsqrt(var + EPS) * g1_ref[...] + beta1_ref[...]

    # ---- feed-forward (dropout = identity in eval) --------------------------------
    h = jnp.dot(src.astype(jnp.bfloat16), w1_ref[...],
                preferred_element_type=jnp.float32) + b1_ref[...]
    h = jnp.maximum(h, 0.0)                  # ReLU
    ff = jnp.dot(h.astype(jnp.bfloat16), w2_ref[...],
                 preferred_element_type=jnp.float32) + b2_ref[...]

    # ---- residual + LayerNorm 2 (dropout2 = identity in eval) ---------------------
    src2 = src + ff
    mu2 = jnp.mean(src2, axis=-1, keepdims=True)
    var2 = jnp.mean((src2 - mu2) ** 2, axis=-1, keepdims=True)
    out = (src2 - mu2) * jax.lax.rsqrt(var2 + EPS) * g2_ref[...] + beta2_ref[...]

    o_ref[...] = out.reshape(bt, s, d).astype(o_ref.dtype)


def _choose_block_batch(B, S, max_rows=512):
    """Largest batch block (divisor of B) with Bt*S <= max_rows, preferring a grid
    extent >= 2 so v7x's two TensorCores both get work."""
    divisors = [bt for bt in range(1, B + 1) if B % bt == 0 and bt * S <= max_rows]
    if not divisors:
        divisors = [1]
    pref = [bt for bt in divisors if B // bt >= 2]
    return max(pref) if pref else max(divisors)


def custom_transformer_encoder_layer(x, params, *, block_batch=None):
    """x: (B, S, D) float32. params: dict of weights (see init_params)."""
    B, S, D = x.shape
    F = params["w1"].shape[1]
    Bt = block_batch or _choose_block_batch(B, S)
    assert B % Bt == 0

    # Fuse QKV weights; store matmul weights in bf16 (f32 accumulation in-kernel).
    # Biases / LayerNorm params stay f32 (added to f32 accumulators).
    wqkv = jnp.concatenate([params["wq"], params["wk"], params["wv"]],
                           axis=1).astype(jnp.bfloat16)            # (D, 3D)
    bqkv = jnp.concatenate([params["bq"], params["bk"], params["bv"]], axis=1)
    wo = params["wo"].astype(jnp.bfloat16)
    w1 = params["w1"].astype(jnp.bfloat16)
    w2 = params["w2"].astype(jnp.bfloat16)

    # Grid-invariant (weight) blocks: constant index_map, so they are not re-DMA'd
    # across grid steps.
    rep = lambda shape: pl.BlockSpec(shape, lambda i: (0, 0))

    in_specs = [
        pl.BlockSpec((Bt, S, D), lambda i: (i, 0, 0)),   # x block
        rep((D, 3 * D)), rep((1, 3 * D)),                # wqkv, bqkv
        rep((D, D)), rep((1, D)),                        # wo, bo
        rep((D, F)), rep((1, F)),                        # w1, b1
        rep((F, D)), rep((1, D)),                        # w2, b2
        rep((1, D)), rep((1, D)),                        # gamma1, beta1
        rep((1, D)), rep((1, D)),                        # gamma2, beta2
    ]

    return pl.pallas_call(
        encoder_layer_kernel,
        out_shape=jax.ShapeDtypeStruct((B, S, D), x.dtype),
        grid_spec=pltpu.PrefetchScalarGridSpec(
            num_scalar_prefetch=0,
            grid=(B // Bt,),
            in_specs=in_specs,
            out_specs=pl.BlockSpec((Bt, S, D), lambda i: (i, 0, 0)),
        ),
        compiler_params=pltpu.CompilerParams(
            dimension_semantics=("parallel",),
            vmem_limit_bytes=64 * 1024 * 1024,
        ),
    )(
        x,
        wqkv, bqkv,
        wo, params["bo"],
        w1, params["b1"],
        w2, params["b2"],
        params["gamma1"], params["beta1"],
        params["gamma2"], params["beta2"],
    )


def init_params(key, d_model, dim_feedforward):
    """Deterministic synthetic parameters. Linear weights stored as (in, out)."""
    keys = jax.random.split(key, 12)

    def lin(k_w, k_b, fan_in, fan_out):
        bound = 1.0 / math.sqrt(fan_in)
        w = jax.random.uniform(k_w, (fan_in, fan_out), jnp.float32, -bound, bound)
        b = jax.random.uniform(k_b, (1, fan_out), jnp.float32, -bound, bound)
        return w, b

    wq, bq = lin(keys[0], keys[1], d_model, d_model)
    wk, bk = lin(keys[2], keys[3], d_model, d_model)
    wv, bv = lin(keys[4], keys[5], d_model, d_model)
    wo, bo = lin(keys[6], keys[7], d_model, d_model)
    w1, b1 = lin(keys[8], keys[9], d_model, dim_feedforward)
    w2, b2 = lin(keys[10], keys[11], dim_feedforward, d_model)

    return {
        "wq": wq, "bq": bq, "wk": wk, "bk": bk, "wv": wv, "bv": bv,
        "wo": wo, "bo": bo, "w1": w1, "b1": b1, "w2": w2, "b2": b2,
        "gamma1": jnp.ones((1, d_model), jnp.float32),
        "beta1": jnp.zeros((1, d_model), jnp.float32),
        "gamma2": jnp.ones((1, d_model), jnp.float32),
        "beta2": jnp.zeros((1, d_model), jnp.float32),
    }


def reference_jax(x, p):
    """Pure-JAX reference of the PyTorch forward (eval mode, no mask), with the same
    bf16-operand / f32-accumulation matmul discipline as the kernel."""
    bf16 = lambda a: a.astype(jnp.bfloat16)
    mm = lambda a, b: jnp.dot(bf16(a), bf16(b), preferred_element_type=jnp.float32)

    def ln(y, g, b):
        mu = y.mean(-1, keepdims=True)
        var = ((y - mu) ** 2).mean(-1, keepdims=True)
        return (y - mu) * jax.lax.rsqrt(var + EPS) * g + b

    B, S, D = x.shape
    x2 = x.reshape(B * S, D)
    q = (mm(x2, p["wq"]) + p["bq"]).reshape(B, S, D)
    k = (mm(x2, p["wk"]) + p["bk"]).reshape(B, S, D)
    v = (mm(x2, p["wv"]) + p["bv"]).reshape(B, S, D)
    s = jnp.einsum("bqd,bkd->bqk", bf16(q), bf16(k),
                   preferred_element_type=jnp.float32) * (1.0 / math.sqrt(D))
    w = jax.nn.softmax(s, axis=-1)
    a = jnp.einsum("bqk,bkd->bqd", bf16(w), bf16(v),
                   preferred_element_type=jnp.float32)
    a = (mm(a.reshape(B * S, D), p["wo"]) + p["bo"]).reshape(B, S, D)
    src = ln(x + a, p["gamma1"], p["beta1"])
    h = jnp.maximum(mm(src.reshape(B * S, D), p["w1"]) + p["b1"], 0.0)
    ff = (mm(h, p["w2"]) + p["b2"]).reshape(B, S, D)
    return ln(src + ff, p["gamma2"], p["beta2"])


if __name__ == "__main__":
    B, S, D, FF = 4, 8, 32, 64  # small shapes consistent with the module

    key = jax.random.PRNGKey(0)
    k_x, k_p = jax.random.split(key)
    x = jax.random.normal(k_x, (B, S, D), jnp.float32)
    params = init_params(k_p, D, FF)

    out = custom_transformer_encoder_layer(x, params)
    out = jax.block_until_ready(out)

    ref = reference_jax(x, params)
    assert out.shape == (B, S, D)
    err = float(jnp.max(jnp.abs(out - ref)))
    assert err < 2e-2, f"mismatch vs reference: {err}"

    print("KERNEL_OK")
</pallas_src>

<mosaic_0001>
module attributes {stable_mosaic.version = 11 : i64} {
  func.func @encoder_layer_kernel(%arg0: i32, %arg1: memref<2x8x32xf32, #tpu.memory_space<vmem>>, %arg2: memref<32x96xbf16, #tpu.memory_space<vmem>>, %arg3: memref<1x96xf32, #tpu.memory_space<vmem>>, %arg4: memref<32x32xbf16, #tpu.memory_space<vmem>>, %arg5: memref<1x32xf32, #tpu.memory_space<vmem>>, %arg6: memref<32x64xbf16, #tpu.memory_space<vmem>>, %arg7: memref<1x64xf32, #tpu.memory_space<vmem>>, %arg8: memref<64x32xbf16, #tpu.memory_space<vmem>>, %arg9: memref<1x32xf32, #tpu.memory_space<vmem>>, %arg10: memref<1x32xf32, #tpu.memory_space<vmem>>, %arg11: memref<1x32xf32, #tpu.memory_space<vmem>>, %arg12: memref<1x32xf32, #tpu.memory_space<vmem>>, %arg13: memref<1x32xf32, #tpu.memory_space<vmem>>, %arg14: memref<2x8x32xf32, #tpu.memory_space<vmem>>) attributes {dimension_semantics = [#tpu.dimension_semantics<parallel>], iteration_bounds = array<i64: 2>, scalar_prefetch = 0 : i64, scratch_operands = 0 : i64, tpu.core_type = #tpu.core_type<tc>, window_params = [{transform_indices = @transform_0, window_bounds = array<i64: 2, 8, 32>}, {pipeline_mode = #tpu.pipeline_mode<synchronous>, transform_indices = @transform_1, window_bounds = array<i64: 32, 96>}, {pipeline_mode = #tpu.pipeline_mode<synchronous>, transform_indices = @transform_2, window_bounds = array<i64: 1, 96>}, {pipeline_mode = #tpu.pipeline_mode<synchronous>, transform_indices = @transform_3, window_bounds = array<i64: 32, 32>}, {pipeline_mode = #tpu.pipeline_mode<synchronous>, transform_indices = @transform_4, window_bounds = array<i64: 1, 32>}, {pipeline_mode = #tpu.pipeline_mode<synchronous>, transform_indices = @transform_5, window_bounds = array<i64: 32, 64>}, {pipeline_mode = #tpu.pipeline_mode<synchronous>, transform_indices = @transform_6, window_bounds = array<i64: 1, 64>}, {pipeline_mode = #tpu.pipeline_mode<synchronous>, transform_indices = @transform_7, window_bounds = array<i64: 64, 32>}, {pipeline_mode = #tpu.pipeline_mode<synchronous>, transform_indices = @transform_8, window_bounds = array<i64: 1, 32>}, {pipeline_mode = #tpu.pipeline_mode<synchronous>, transform_indices = @transform_9, window_bounds = array<i64: 1, 32>}, {pipeline_mode = #tpu.pipeline_mode<synchronous>, transform_indices = @transform_10, window_bounds = array<i64: 1, 32>}, {pipeline_mode = #tpu.pipeline_mode<synchronous>, transform_indices = @transform_11, window_bounds = array<i64: 1, 32>}, {pipeline_mode = #tpu.pipeline_mode<synchronous>, transform_indices = @transform_12, window_bounds = array<i64: 1, 32>}, {transform_indices = @transform_13, window_bounds = array<i64: 2, 8, 32>}]} {
    %c0 = arith.constant 0 : index
    %c0_0 = arith.constant 0 : index
    %c0_1 = arith.constant 0 : index
    %0 = vector.load %arg1[%c0, %c0_0, %c0_1] : memref<2x8x32xf32, #tpu.memory_space<vmem>>, vector<2x8x32xf32>
    %1 = vector.shape_cast %0 : vector<2x8x32xf32> to vector<16x32xf32>
    %2 = arith.truncf %1 : vector<16x32xf32> to vector<16x32xbf16>
    %c0_2 = arith.constant 0 : index
    %c0_3 = arith.constant 0 : index
    %3 = vector.load %arg2[%c0_2, %c0_3] : memref<32x96xbf16, #tpu.memory_space<vmem>>, vector<32x96xbf16>
    %cst = arith.constant dense<0.000000e+00> : vector<16x96xf32>
    %4 = tpu.matmul %2, %3, %cst {dimension_numbers = #tpu.dot_dimension_numbers<[1], [0], [0], [1], [0, 0, 1, 1], [], []>} : vector<16x32xbf16>, vector<32x96xbf16>, vector<16x96xf32> -> vector<16x96xf32>
    %c0_4 = arith.constant 0 : index
    %c0_5 = arith.constant 0 : index
    %5 = vector.load %arg3[%c0_4, %c0_5] : memref<1x96xf32, #tpu.memory_space<vmem>>, vector<1x96xf32>
    %6 = vector.broadcast %5 : vector<1x96xf32> to vector<16x96xf32>
    %7 = arith.addf %4, %6 : vector<16x96xf32>
    %8 = vector.extract_strided_slice %7 {offsets = [0, 0], sizes = [16, 32], strides = [1, 1]} : vector<16x96xf32> to vector<16x32xf32>
    %9 = vector.extract_strided_slice %7 {offsets = [0, 32], sizes = [16, 32], strides = [1, 1]} : vector<16x96xf32> to vector<16x32xf32>
    %10 = vector.extract_strided_slice %7 {offsets = [0, 64], sizes = [16, 32], strides = [1, 1]} : vector<16x96xf32> to vector<16x32xf32>
    %11 = vector.shape_cast %8 : vector<16x32xf32> to vector<2x8x32xf32>
    %12 = arith.truncf %11 : vector<2x8x32xf32> to vector<2x8x32xbf16>
    %13 = vector.shape_cast %9 : vector<16x32xf32> to vector<2x8x32xf32>
    %14 = arith.truncf %13 : vector<2x8x32xf32> to vector<2x8x32xbf16>
    %15 = vector.shape_cast %10 : vector<16x32xf32> to vector<2x8x32xf32>
    %16 = arith.truncf %15 : vector<2x8x32xf32> to vector<2x8x32xbf16>
    "tpu.trace_start"() <{level = 10 : i32, message = "bqd,bkd->bqk"}> : () -> ()
    %cst_6 = arith.constant dense<0.000000e+00> : vector<2x8x8xf32>
    %17 = tpu.matmul %12, %14, %cst_6 {dimension_numbers = #tpu.dot_dimension_numbers<[2], [2], [1], [1], [0, 0, 0, 1, 1, 1], [0], [0]>} : vector<2x8x32xbf16>, vector<2x8x32xbf16>, vector<2x8x8xf32> -> vector<2x8x8xf32>
    "tpu.trace_stop"() : () -> ()
    %cst_7 = arith.constant 0.176776692 : f32
    %18 = vector.broadcast %cst_7 : f32 to vector<2x8x8xf32>
    %19 = arith.mulf %17, %18 : vector<2x8x8xf32>
    %cst_8 = arith.constant dense<0xFF800000> : vector<2x8xf32>
    %20 = vector.multi_reduction <maximumf>, %19, %cst_8 [2] : vector<2x8x8xf32> to vector<2x8xf32>
    %21 = vector.shape_cast %20 : vector<2x8xf32> to vector<2x8x1xf32>
    %22 = vector.broadcast %21 : vector<2x8x1xf32> to vector<2x8x8xf32>
    %23 = arith.subf %19, %22 : vector<2x8x8xf32>
    %24 = math.exp %23 : vector<2x8x8xf32>
    %cst_9 = arith.constant dense<0.000000e+00> : vector<2x8xf32>
    %25 = vector.multi_reduction <add>, %24, %cst_9 [2] : vector<2x8x8xf32> to vector<2x8xf32>
    %26 = vector.shape_cast %25 : vector<2x8xf32> to vector<2x8x1xf32>
    %27 = tpu.reciprocal %26 {approx = true} : vector<2x8x1xf32> -> vector<2x8x1xf32>
    %28 = vector.broadcast %27 : vector<2x8x1xf32> to vector<2x8x8xf32>
    %29 = arith.mulf %24, %28 : vector<2x8x8xf32>
    %30 = arith.truncf %29 : vector<2x8x8xf32> to vector<2x8x8xbf16>
    "tpu.trace_start"() <{level = 10 : i32, message = "bqk,bkd->bqd"}> : () -> ()
    %cst_10 = arith.constant dense<0.000000e+00> : vector<2x8x32xf32>
    %31 = tpu.matmul %30, %16, %cst_10 {dimension_numbers = #tpu.dot_dimension_numbers<[2], [1], [1], [2], [0, 0, 0, 1, 1, 2], [0], [0]>} : vector<2x8x8xbf16>, vector<2x8x32xbf16>, vector<2x8x32xf32> -> vector<2x8x32xf32>
    "tpu.trace_stop"() : () -> ()
    %32 = vector.shape_cast %31 : vector<2x8x32xf32> to vector<16x32xf32>
    %33 = arith.truncf %32 : vector<16x32xf32> to vector<16x32xbf16>
    %c0_11 = arith.constant 0 : index
    %c0_12 = arith.constant 0 : index
    %34 = vector.load %arg4[%c0_11, %c0_12] : memref<32x32xbf16, #tpu.memory_space<vmem>>, vector<32x32xbf16>
    %cst_13 = arith.constant dense<0.000000e+00> : vector<16x32xf32>
    %35 = tpu.matmul %33, %34, %cst_13 {dimension_numbers = #tpu.dot_dimension_numbers<[1], [0], [0], [1], [0, 0, 1, 1], [], []>} : vector<16x32xbf16>, vector<32x32xbf16>, vector<16x32xf32> -> vector<16x32xf32>
    %c0_14 = arith.constant 0 : index
    %c0_15 = arith.constant 0 : index
    %36 = vector.load %arg5[%c0_14, %c0_15] : memref<1x32xf32, #tpu.memory_space<vmem>>, vector<1x32xf32>
    %37 = vector.broadcast %36 : vector<1x32xf32> to vector<16x32xf32>
    %38 = arith.addf %35, %37 : vector<16x32xf32>
    %39 = arith.addf %1, %38 : vector<16x32xf32>
    %cst_16 = arith.constant dense<0.000000e+00> : vector<16xf32>
    %40 = vector.multi_reduction <add>, %39, %cst_16 [1] : vector<16x32xf32> to vector<16xf32>
    %41 = vector.shape_cast %40 : vector<16xf32> to vector<16x1xf32>
    %cst_17 = arith.constant 3.200000e+01 : f32
    %42 = vector.broadcast %cst_17 : f32 to vector<16x1xf32>
    %43 = arith.divf %41, %42 : vector<16x1xf32>
    %44 = vector.broadcast %43 : vector<16x1xf32> to vector<16x32xf32>
    %45 = arith.subf %39, %44 : vector<16x32xf32>
    %46 = arith.mulf %45, %45 : vector<16x32xf32>
    %cst_18 = arith.constant dense<0.000000e+00> : vector<16xf32>
    %47 = vector.multi_reduction <add>, %46, %cst_18 [1] : vector<16x32xf32> to vector<16xf32>
    %48 = vector.shape_cast %47 : vector<16xf32> to vector<16x1xf32>
    %cst_19 = arith.constant 3.200000e+01 : f32
    %49 = vector.broadcast %cst_19 : f32 to vector<16x1xf32>
    %50 = arith.divf %48, %49 : vector<16x1xf32>
    %51 = vector.broadcast %43 : vector<16x1xf32> to vector<16x32xf32>
    %52 = arith.subf %39, %51 : vector<16x32xf32>
    %cst_20 = arith.constant 9.99999974E-6 : f32
    %53 = vector.broadcast %cst_20 : f32 to vector<16x1xf32>
    %54 = arith.addf %50, %53 : vector<16x1xf32>
    %55 = math.rsqrt %54 : vector<16x1xf32>
    %56 = vector.broadcast %55 : vector<16x1xf32> to vector<16x32xf32>
    %57 = arith.mulf %52, %56 : vector<16x32xf32>
    %c0_21 = arith.constant 0 : index
    %c0_22 = arith.constant 0 : index
    %58 = vector.load %arg10[%c0_21, %c0_22] : memref<1x32xf32, #tpu.memory_space<vmem>>, vector<1x32xf32>
    %59 = vector.broadcast %58 : vector<1x32xf32> to vector<16x32xf32>
    %60 = arith.mulf %57, %59 : vector<16x32xf32>
    %c0_23 = arith.constant 0 : index
    %c0_24 = arith.constant 0 : index
    %61 = vector.load %arg11[%c0_23, %c0_24] : memref<1x32xf32, #tpu.memory_space<vmem>>, vector<1x32xf32>
    %62 = vector.broadcast %61 : vector<1x32xf32> to vector<16x32xf32>
    %63 = arith.addf %60, %62 : vector<16x32xf32>
    %64 = arith.truncf %63 : vector<16x32xf32> to vector<16x32xbf16>
    %c0_25 = arith.constant 0 : index
    %c0_26 = arith.constant 0 : index
    %65 = vector.load %arg6[%c0_25, %c0_26] : memref<32x64xbf16, #tpu.memory_space<vmem>>, vector<32x64xbf16>
    %cst_27 = arith.constant dense<0.000000e+00> : vector<16x64xf32>
    %66 = tpu.matmul %64, %65, %cst_27 {dimension_numbers = #tpu.dot_dimension_numbers<[1], [0], [0], [1], [0, 0, 1, 1], [], []>} : vector<16x32xbf16>, vector<32x64xbf16>, vector<16x64xf32> -> vector<16x64xf32>
    %c0_28 = arith.constant 0 : index
    %c0_29 = arith.constant 0 : index
    %67 = vector.load %arg7[%c0_28, %c0_29] : memref<1x64xf32, #tpu.memory_space<vmem>>, vector<1x64xf32>
    %68 = vector.broadcast %67 : vector<1x64xf32> to vector<16x64xf32>
    %69 = arith.addf %66, %68 : vector<16x64xf32>
    %cst_30 = arith.constant 0.000000e+00 : f32
    %70 = vector.broadcast %cst_30 : f32 to vector<16x64xf32>
    %71 = arith.maximumf %69, %70 : vector<16x64xf32>
    %72 = arith.truncf %71 : vector<16x64xf32> to vector<16x64xbf16>
    %c0_31 = arith.constant 0 : index
    %c0_32 = arith.constant 0 : index
    %73 = vector.load %arg8[%c0_31, %c0_32] : memref<64x32xbf16, #tpu.memory_space<vmem>>, vector<64x32xbf16>
    %cst_33 = arith.constant dense<0.000000e+00> : vector<16x32xf32>
    %74 = tpu.matmul %72, %73, %cst_33 {dimension_numbers = #tpu.dot_dimension_numbers<[1], [0], [0], [1], [0, 0, 1, 1], [], []>} : vector<16x64xbf16>, vector<64x32xbf16>, vector<16x32xf32> -> vector<16x32xf32>
    %c0_34 = arith.constant 0 : index
    %c0_35 = arith.constant 0 : index
    %75 = vector.load %arg9[%c0_34, %c0_35] : memref<1x32xf32, #tpu.memory_space<vmem>>, vector<1x32xf32>
    %76 = vector.broadcast %75 : vector<1x32xf32> to vector<16x32xf32>
    %77 = arith.addf %74, %76 : vector<16x32xf32>
    %78 = arith.addf %63, %77 : vector<16x32xf32>
    %cst_36 = arith.constant dense<0.000000e+00> : vector<16xf32>
    %79 = vector.multi_reduction <add>, %78, %cst_36 [1] : vector<16x32xf32> to vector<16xf32>
    %80 = vector.shape_cast %79 : vector<16xf32> to vector<16x1xf32>
    %cst_37 = arith.constant 3.200000e+01 : f32
    %81 = vector.broadcast %cst_37 : f32 to vector<16x1xf32>
    %82 = arith.divf %80, %81 : vector<16x1xf32>
    %83 = vector.broadcast %82 : vector<16x1xf32> to vector<16x32xf32>
    %84 = arith.subf %78, %83 : vector<16x32xf32>
    %85 = arith.mulf %84, %84 : vector<16x32xf32>
    %cst_38 = arith.constant dense<0.000000e+00> : vector<16xf32>
    %86 = vector.multi_reduction <add>, %85, %cst_38 [1] : vector<16x32xf32> to vector<16xf32>
    %87 = vector.shape_cast %86 : vector<16xf32> to vector<16x1xf32>
    %cst_39 = arith.constant 3.200000e+01 : f32
    %88 = vector.broadcast %cst_39 : f32 to vector<16x1xf32>
    %89 = arith.divf %87, %88 : vector<16x1xf32>
    %90 = vector.broadcast %82 : vector<16x1xf32> to vector<16x32xf32>
    %91 = arith.subf %78, %90 : vector<16x32xf32>
    %cst_40 = arith.constant 9.99999974E-6 : f32
    %92 = vector.broadcast %cst_40 : f32 to vector<16x1xf32>
    %93 = arith.addf %89, %92 : vector<16x1xf32>
    %94 = math.rsqrt %93 : vector<16x1xf32>
    %95 = vector.broadcast %94 : vector<16x1xf32> to vector<16x32xf32>
    %96 = arith.mulf %91, %95 : vector<16x32xf32>
    %c0_41 = arith.constant 0 : index
    %c0_42 = arith.constant 0 : index
    %97 = vector.load %arg12[%c0_41, %c0_42] : memref<1x32xf32, #tpu.memory_space<vmem>>, vector<1x32xf32>
    %98 = vector.broadcast %97 : vector<1x32xf32> to vector<16x32xf32>
    %99 = arith.mulf %96, %98 : vector<16x32xf32>
    %c0_43 = arith.constant 0 : index
    %c0_44 = arith.constant 0 : index
    %100 = vector.load %arg13[%c0_43, %c0_44] : memref<1x32xf32, #tpu.memory_space<vmem>>, vector<1x32xf32>
    %101 = vector.broadcast %100 : vector<1x32xf32> to vector<16x32xf32>
    %102 = arith.addf %99, %101 : vector<16x32xf32>
    %103 = vector.shape_cast %102 : vector<16x32xf32> to vector<2x8x32xf32>
    %c0_45 = arith.constant 0 : index
    %c0_46 = arith.constant 0 : index
    %c0_47 = arith.constant 0 : index
    %104 = vector.load %arg14[%c0_45, %c0_46, %c0_47] : memref<2x8x32xf32, #tpu.memory_space<vmem>>, vector<2x8x32xf32>
    tpu.vector_store %arg14[%c0_45, %c0_46, %c0_47], %103 {strides = array<i32>} : memref<2x8x32xf32, #tpu.memory_space<vmem>>, vector<2x8x32xf32>,
    return
  }
  func.func @transform_0(%arg0: i32) -> (i32, i32, i32) {
    %c0_i32 = arith.constant 0 : i32
    %c0_i32_0 = arith.constant 0 : i32
    %c0_i32_1 = arith.constant 0 : i32
    return %arg0, %c0_i32, %c0_i32_0 : i32, i32, i32
  }
  func.func @transform_1(%arg0: i32) -> (i32, i32) {
    %c0_i32 = arith.constant 0 : i32
    %c0_i32_0 = arith.constant 0 : i32
    %c0_i32_1 = arith.constant 0 : i32
    return %c0_i32, %c0_i32_0 : i32, i32
  }
  func.func @transform_2(%arg0: i32) -> (i32, i32) {
    %c0_i32 = arith.constant 0 : i32
    %c0_i32_0 = arith.constant 0 : i32
    %c0_i32_1 = arith.constant 0 : i32
    return %c0_i32, %c0_i32_0 : i32, i32
  }
  func.func @transform_3(%arg0: i32) -> (i32, i32) {
    %c0_i32 = arith.constant 0 : i32
    %c0_i32_0 = arith.constant 0 : i32
    %c0_i32_1 = arith.constant 0 : i32
    return %c0_i32, %c0_i32_0 : i32, i32
  }
  func.func @transform_4(%arg0: i32) -> (i32, i32) {
    %c0_i32 = arith.constant 0 : i32
    %c0_i32_0 = arith.constant 0 : i32
    %c0_i32_1 = arith.constant 0 : i32
    return %c0_i32, %c0_i32_0 : i32, i32
  }
  func.func @transform_5(%arg0: i32) -> (i32, i32) {
    %c0_i32 = arith.constant 0 : i32
    %c0_i32_0 = arith.constant 0 : i32
    %c0_i32_1 = arith.constant 0 : i32
    return %c0_i32, %c0_i32_0 : i32, i32
  }
  func.func @transform_6(%arg0: i32) -> (i32, i32) {
    %c0_i32 = arith.constant 0 : i32
    %c0_i32_0 = arith.constant 0 : i32
    %c0_i32_1 = arith.constant 0 : i32
    return %c0_i32, %c0_i32_0 : i32, i32
  }
  func.func @transform_7(%arg0: i32) -> (i32, i32) {
    %c0_i32 = arith.constant 0 : i32
    %c0_i32_0 = arith.constant 0 : i32
    %c0_i32_1 = arith.constant 0 : i32
    return %c0_i32, %c0_i32_0 : i32, i32
  }
  func.func @transform_8(%arg0: i32) -> (i32, i32) {
    %c0_i32 = arith.constant 0 : i32
    %c0_i32_0 = arith.constant 0 : i32
    %c0_i32_1 = arith.constant 0 : i32
    return %c0_i32, %c0_i32_0 : i32, i32
  }
  func.func @transform_9(%arg0: i32) -> (i32, i32) {
    %c0_i32 = arith.constant 0 : i32
    %c0_i32_0 = arith.constant 0 : i32
    %c0_i32_1 = arith.constant 0 : i32
    return %c0_i32, %c0_i32_0 : i32, i32
  }
  func.func @transform_10(%arg0: i32) -> (i32, i32) {
    %c0_i32 = arith.constant 0 : i32
    %c0_i32_0 = arith.constant 0 : i32
    %c0_i32_1 = arith.constant 0 : i32
    return %c0_i32, %c0_i32_0 : i32, i32
  }
  func.func @transform_11(%arg0: i32) -> (i32, i32) {
    %c0_i32 = arith.constant 0 : i32
    %c0_i32_0 = arith.constant 0 : i32
    %c0_i32_1 = arith.constant 0 : i32
    return %c0_i32, %c0_i32_0 : i32, i32
  }
  func.func @transform_12(%arg0: i32) -> (i32, i32) {
    %c0_i32 = arith.constant 0 : i32
    %c0_i32_0 = arith.constant 0 : i32
    %c0_i32_1 = arith.constant 0 : i32
    return %c0_i32, %c0_i32_0 : i32, i32
  }
  func.func @transform_13(%arg0: i32) -> (i32, i32, i32) {
    %c0_i32 = arith.constant 0 : i32
    %c0_i32_0 = arith.constant 0 : i32
    %c0_i32_1 = arith.constant 0 : i32
    return %arg0, %c0_i32, %c0_i32_0 : i32, i32, i32
  }
}

</mosaic_0001>

<llo_original>
// kernel: tpu_custom_call.1
$region0: #{tpu_custom_call.1}
  #allocation0 [shape = 'u32[]', space=smem, size = 0x4, offset = 0x4, fixed_abs, tag = 'smem constant byte address 0x4 - core index']
  #allocation1 [shape = 'u32[144,128]{1,0:T(1,128)}', space=vmem, size = 0x12000, scoped, tag = 'internal scratch']
  %s0 = inlined_call_operand.vmem [shape: f32[4,8,32], index: 0, kind: input, shape index: {}]
  %s1 = inlined_call_operand.vmem [shape: bf16[32,96], index: 1, kind: input, shape index: {}]
  %s2 = inlined_call_operand.vmem [shape: f32[1,96], index: 2, kind: input, shape index: {}]
  %s3 = inlined_call_operand.hbm [shape: bf16[32,32], index: 3, kind: input, shape index: {}]
  %s4 = inlined_call_operand.vmem [shape: f32[1,32], index: 4, kind: input, shape index: {}]
  %s5 = inlined_call_operand.hbm [shape: bf16[32,64], index: 5, kind: input, shape index: {}]
  %s6 = inlined_call_operand.vmem [shape: f32[1,64], index: 6, kind: input, shape index: {}]
  %s7 = inlined_call_operand.vmem [shape: bf16[64,32], index: 7, kind: input, shape index: {}]
  %s8 = inlined_call_operand.vmem [shape: f32[1,32], index: 8, kind: input, shape index: {}]
  %s9 = inlined_call_operand.vmem [shape: f32[1,32], index: 9, kind: input, shape index: {}]
  %s10 = inlined_call_operand.vmem [shape: f32[1,32], index: 10, kind: input, shape index: {}]
  %s11 = inlined_call_operand.vmem [shape: f32[1,32], index: 11, kind: input, shape index: {}]
  %s12 = inlined_call_operand.vmem [shape: f32[1,32], index: 12, kind: input, shape index: {}]
  %s13 = inlined_call_operand.hbm [shape: f32[4,8,32], index: 13, kind: output, shape index: {}]
  %s14 = sld [smem:[#allocation0]]
  $region93: #{tpu_custom_call.1} parent=0
    _
  %s16 = ssub.s32 1, %s14
  %s17 = scalar_select 0, %s16, %s14
  $region1: #{tpu_custom_call.1} parent=0
    #allocation2 [shape = 'u8[8192]{0}', space=vmem, size = 0x2000, scoped, tag = 'input window, operand 3, single buffered']
    #allocation3 [shape = 's32[2]{0}', space=sflag, size = 0x8, scoped, tag = 'scoped memory for tpu_custom_call.1']
    #allocation4 [shape = 's32[2]{0}', space=sflag, size = 0x8, scoped, tag = 'scoped memory for tpu_custom_call.1']
    #allocation5 [shape = 'u8[8192]{0}', space=vmem, size = 0x2000, scoped, tag = 'input window, operand 5, single buffered']
    #allocation6 [shape = 's32[1]{0}', space=sflag, size = 0x4, scoped, tag = 'scoped memory for tpu_custom_call.1']
    #allocation7 [shape = 'u8[16384]{0}', space=vmem, size = 0x4000, scoped, tag = 'output window, operand 0']
    %18 = vsyncpa [#allocation3], 0
    %19 = vsyncpa [#allocation6], 0
    %20 = vsyncpa [#allocation4], 0
    %s21 = scalar_lea.sflag [#allocation4], 1
    %22 = vsyncpa %s21, 0
    loop: start=0, step=1, limit=4
    $region2: #{tpu_custom_call.1} parent=1 // loop_pre_header
      _
    $region3: #{tpu_custom_call.1} parent=1 // loop_header
      %s24 = sphi 0, %s28
      %p25 = scmp.ge.s32.totalorder %s24, 4
      %s34 = sphi 0, %s36
      %s37 = sphi 0, %s34
      %s38 = sphi 0, %s37
      %s54 = sphi 0, %s38
      %s58 = sphi 0, %s58
      %s60 = sphi 0, %s58
      %s61 = sphi 0, %s60
      %s75 = sphi 0, %s61
      %s79 = sphi 0, %s79
      %s81 = sphi 0, %s79
      %s82 = sphi 0, %s81
      %s96 = sphi 0, %s82
      %s100 = sphi 0, %s100
      %s102 = sphi 0, %s100
      %s103 = sphi 0, %s102
      %s117 = sphi 0, %s103
      %s121 = sphi 0, %s121
      %s123 = sphi 0, %s121
      %s124 = sphi 0, %s123
      %s138 = sphi 0, %s124
      %s142 = sphi 0, %s142
      %s144 = sphi 0, %s142
      %s145 = sphi 0, %s144
      %s159 = sphi 0, %s145
      %s163 = sphi 0, %s163
      %s165 = sphi 0, %s163
      %s166 = sphi 0, %s165
      %s180 = sphi 0, %s166
      %s184 = sphi 0, %s184
      %s186 = sphi 0, %s184
      %s187 = sphi 0, %s186
      %s201 = sphi 0, %s187
      %s205 = sphi 0, %s205
      %s207 = sphi 0, %s205
      %s208 = sphi 0, %s207
      %s222 = sphi 0, %s208
      %s226 = sphi 0, %s226
      %s228 = sphi 0, %s226
      %s229 = sphi 0, %s228
      %s243 = sphi 0, %s229
      %s247 = sphi 0, %s247
      %s249 = sphi 0, %s247
      %s250 = sphi 0, %s249
      %s264 = sphi 0, %s250
      %s268 = sphi 0, %s268
      %s270 = sphi 0, %s268
      %s271 = sphi 0, %s270
      %s285 = sphi 0, %s271
      %s289 = sphi 0, %s289
      %s291 = sphi 0, %s289
      %s292 = sphi 0, %s291
      %s306 = sphi 0, %s292
      %s312 = sphi 0, %s314
      %s315 = sphi 0, %s312
      %s316 = sphi 0, %s315
      %s332 = sphi 0, %s316
    $region4: #{tpu_custom_call.1} parent=1 // loop_header_branch
      %27 = sbr.rel (%p25) target = $region8
    $region5: #{tpu_custom_call.1} parent=1 // loop_body
      %s29 = ssub.s32 %s24, 1
      %s30 = ssub.s32 %s24, 2
      %s31 = sadd.s32 %s24, 1
      %s32 = ssub.s32 %s24, %s31
      %p33 = scmp.eq.s32.totalorder %s32, 0
      %s35 = sadd.s32 %s34, 1
      %s36 = scalar_select %p33, %s34, %s35
      %p39 = pneg %p33
      %p40 = scmp.eq.s32.totalorder %s24, 1
      %p41 = por %p39, %p40
      %p42 = scmp.ne.s32.totalorder %s34, %s37
      %p43 = scmp.eq.s32.totalorder %s24, 0
      %p44 = por %p42, %p43
      %p45 = scmp.ne.s32.totalorder %s34, %s37
      %p46 = scmp.eq.s32.totalorder %s29, 1
      %p47 = por %p45, %p46
      %p48 = scmp.ne.s32.totalorder %s37, %s38
      %p49 = scmp.eq.s32.totalorder %s29, 0
      %p50 = por %p48, %p49
      %p51 = scmp.ne.s32.totalorder %s37, %s38
      %p52 = scmp.eq.s32.totalorder %s30, 1
      %p53 = por %p51, %p52
      %p55 = scmp.ne.s32.totalorder %s38, %s54
      %p56 = scmp.eq.s32.totalorder %s30, 0
      %p57 = por %p55, %p56
      %s59 = sadd.s32 %s58, 1
      %p62 = scmp.eq.s32.totalorder %s24, 1
      %p63 = scmp.ne.s32.totalorder %s58, %s60
      %p64 = scmp.eq.s32.totalorder %s24, 0
      %p65 = por %p63, %p64
      %p66 = scmp.ne.s32.totalorder %s58, %s60
      %p67 = scmp.eq.s32.totalorder %s29, 1
      %p68 = por %p66, %p67
      %p69 = scmp.ne.s32.totalorder %s60, %s61
      %p70 = scmp.eq.s32.totalorder %s29, 0
      %p71 = por %p69, %p70
      %p72 = scmp.ne.s32.totalorder %s60, %s61
      %p73 = scmp.eq.s32.totalorder %s30, 1
      %p74 = por %p72, %p73
      %p76 = scmp.ne.s32.totalorder %s61, %s75
      %p77 = scmp.eq.s32.totalorder %s30, 0
      %p78 = por %p76, %p77
      %s80 = sadd.s32 %s79, 1
      %p83 = scmp.eq.s32.totalorder %s24, 1
      %p84 = scmp.ne.s32.totalorder %s79, %s81
      %p85 = scmp.eq.s32.totalorder %s24, 0
      %p86 = por %p84, %p85
      %p87 = scmp.ne.s32.totalorder %s79, %s81
      %p88 = scmp.eq.s32.totalorder %s29, 1
      %p89 = por %p87, %p88
      %p90 = scmp.ne.s32.totalorder %s81, %s82
      %p91 = scmp.eq.s32.totalorder %s29, 0
      %p92 = por %p90, %p91
      %p93 = scmp.ne.s32.totalorder %s81, %s82
      %p94 = scmp.eq.s32.totalorder %s30, 1
      %p95 = por %p93, %p94
      %p97 = scmp.ne.s32.totalorder %s82, %s96
      %p98 = scmp.eq.s32.totalorder %s30, 0
      %p99 = por %p97, %p98
      %s101 = sadd.s32 %s100, 1
      %p104 = scmp.eq.s32.totalorder %s24, 1
      %p105 = scmp.ne.s32.totalorder %s100, %s102
      %p106 = scmp.eq.s32.totalorder %s24, 0
      %p107 = por %p105, %p106
      %p108 = scmp.ne.s32.totalorder %s100, %s102
      %p109 = scmp.eq.s32.totalorder %s29, 1
      %p110 = por %p108, %p109
      %p111 = scmp.ne.s32.totalorder %s102, %s103
      %p112 = scmp.eq.s32.totalorder %s29, 0
      %p113 = por %p111, %p112
      %p114 = scmp.ne.s32.totalorder %s102, %s103
      %p115 = scmp.eq.s32.totalorder %s30, 1
      %p116 = por %p114, %p115
      %p118 = scmp.ne.s32.totalorder %s103, %s117
      %p119 = scmp.eq.s32.totalorder %s30, 0
      %p120 = por %p118, %p119
      %s122 = sadd.s32 %s121, 1
      %p125 = scmp.eq.s32.totalorder %s24, 1
      %p126 = scmp.ne.s32.totalorder %s121, %s123
      %p127 = scmp.eq.s32.totalorder %s24, 0
      %p128 = por %p126, %p127
      %p129 = scmp.ne.s32.totalorder %s121, %s123
      %p130 = scmp.eq.s32.totalorder %s29, 1
      %p131 = por %p129, %p130
      %p132 = scmp.ne.s32.totalorder %s123, %s124
      %p133 = scmp.eq.s32.totalorder %s29, 0
      %p134 = por %p132, %p133
      %p135 = scmp.ne.s32.totalorder %s123, %s124
      %p136 = scmp.eq.s32.totalorder %s30, 1
      %p137 = por %p135, %p136
      %p139 = scmp.ne.s32.totalorder %s124, %s138
      %p140 = scmp.eq.s32.totalorder %s30, 0
      %p141 = por %p139, %p140
      %s143 = sadd.s32 %s142, 1
      %p146 = scmp.eq.s32.totalorder %s24, 1
      %p147 = scmp.ne.s32.totalorder %s142, %s144
      %p148 = scmp.eq.s32.totalorder %s24, 0
      %p149 = por %p147, %p148
      %p150 = scmp.ne.s32.totalorder %s142, %s144
      %p151 = scmp.eq.s32.totalorder %s29, 1
      %p152 = por %p150, %p151
      %p153 = scmp.ne.s32.totalorder %s144, %s145
      %p154 = scmp.eq.s32.totalorder %s29, 0
      %p155 = por %p153, %p154
      %p156 = scmp.ne.s32.totalorder %s144, %s145
      %p157 = scmp.eq.s32.totalorder %s30, 1
      %p158 = por %p156, %p157
      %p160 = scmp.ne.s32.totalorder %s145, %s159
      %p161 = scmp.eq.s32.totalorder %s30, 0
      %p162 = por %p160, %p161
      %s164 = sadd.s32 %s163, 1
      %p167 = scmp.eq.s32.totalorder %s24, 1
      %p168 = scmp.ne.s32.totalorder %s163, %s165
      %p169 = scmp.eq.s32.totalorder %s24, 0
      %p170 = por %p168, %p169
      %p171 = scmp.ne.s32.totalorder %s163, %s165
      %p172 = scmp.eq.s32.totalorder %s29, 1
      %p173 = por %p171, %p172
      %p174 = scmp.ne.s32.totalorder %s165, %s166
      %p175 = scmp.eq.s32.totalorder %s29, 0
      %p176 = por %p174, %p175
      %p177 = scmp.ne.s32.totalorder %s165, %s166
      %p178 = scmp.eq.s32.totalorder %s30, 1
      %p179 = por %p177, %p178
      %p181 = scmp.ne.s32.totalorder %s166, %s180
      %p182 = scmp.eq.s32.totalorder %s30, 0
      %p183 = por %p181, %p182
      %s185 = sadd.s32 %s184, 1
      %p188 = scmp.eq.s32.totalorder %s24, 1
      %p189 = scmp.ne.s32.totalorder %s184, %s186
      %p190 = scmp.eq.s32.totalorder %s24, 0
      %p191 = por %p189, %p190
      %p192 = scmp.ne.s32.totalorder %s184, %s186
      %p193 = scmp.eq.s32.totalorder %s29, 1
      %p194 = por %p192, %p193
      %p195 = scmp.ne.s32.totalorder %s186, %s187
      %p196 = scmp.eq.s32.totalorder %s29, 0
      %p197 = por %p195, %p196
      %p198 = scmp.ne.s32.totalorder %s186, %s187
      %p199 = scmp.eq.s32.totalorder %s30, 1
      %p200 = por %p198, %p199
      %p202 = scmp.ne.s32.totalorder %s187, %s201
      %p203 = scmp.eq.s32.totalorder %s30, 0
      %p204 = por %p202, %p203
      %s206 = sadd.s32 %s205, 1
      %p209 = scmp.eq.s32.totalorder %s24, 1
      %p210 = scmp.ne.s32.totalorder %s205, %s207
      %p211 = scmp.eq.s32.totalorder %s24, 0
      %p212 = por %p210, %p211
      %p213 = scmp.ne.s32.totalorder %s205, %s207
      %p214 = scmp.eq.s32.totalorder %s29, 1
      %p215 = por %p213, %p214
      %p216 = scmp.ne.s32.totalorder %s207, %s208
      %p217 = scmp.eq.s32.totalorder %s29, 0
      %p218 = por %p216, %p217
      %p219 = scmp.ne.s32.totalorder %s207, %s208
      %p220 = scmp.eq.s32.totalorder %s30, 1
      %p221 = por %p219, %p220
      %p223 = scmp.ne.s32.totalorder %s208, %s222
      %p224 = scmp.eq.s32.totalorder %s30, 0
      %p225 = por %p223, %p224
      %s227 = sadd.s32 %s226, 1
      %p230 = scmp.eq.s32.totalorder %s24, 1
      %p231 = scmp.ne.s32.totalorder %s226, %s228
      %p232 = scmp.eq.s32.totalorder %s24, 0
      %p233 = por %p231, %p232
      %p234 = scmp.ne.s32.totalorder %s226, %s228
      %p235 = scmp.eq.s32.totalorder %s29, 1
      %p236 = por %p234, %p235
      %p237 = scmp.ne.s32.totalorder %s228, %s229
      %p238 = scmp.eq.s32.totalorder %s29, 0
      %p239 = por %p237, %p238
      %p240 = scmp.ne.s32.totalorder %s228, %s229
      %p241 = scmp.eq.s32.totalorder %s30, 1
      %p242 = por %p240, %p241
      %p244 = scmp.ne.s32.totalorder %s229, %s243
      %p245 = scmp.eq.s32.totalorder %s30, 0
      %p246 = por %p244, %p245
      %s248 = sadd.s32 %s247, 1
      %p251 = scmp.eq.s32.totalorder %s24, 1
      %p252 = scmp.ne.s32.totalorder %s247, %s249
      %p253 = scmp.eq.s32.totalorder %s24, 0
      %p254 = por %p252, %p253
      %p255 = scmp.ne.s32.totalorder %s247, %s249
      %p256 = scmp.eq.s32.totalorder %s29, 1
      %p257 = por %p255, %p256
      %p258 = scmp.ne.s32.totalorder %s249, %s250
      %p259 = scmp.eq.s32.totalorder %s29, 0
      %p260 = por %p258, %p259
      %p261 = scmp.ne.s32.totalorder %s249, %s250
      %p262 = scmp.eq.s32.totalorder %s30, 1
      %p263 = por %p261, %p262
      %p265 = scmp.ne.s32.totalorder %s250, %s264
      %p266 = scmp.eq.s32.totalorder %s30, 0
      %p267 = por %p265, %p266
      %s269 = sadd.s32 %s268, 1
      %p272 = scmp.eq.s32.totalorder %s24, 1
      %p273 = scmp.ne.s32.totalorder %s268, %s270
      %p274 = scmp.eq.s32.totalorder %s24, 0
      %p275 = por %p273, %p274
      %p276 = scmp.ne.s32.totalorder %s268, %s270
      %p277 = scmp.eq.s32.totalorder %s29, 1
      %p278 = por %p276, %p277
      %p279 = scmp.ne.s32.totalorder %s270, %s271
      %p280 = scmp.eq.s32.totalorder %s29, 0
      %p281 = por %p279, %p280
      %p282 = scmp.ne.s32.totalorder %s270, %s271
      %p283 = scmp.eq.s32.totalorder %s30, 1
      %p284 = por %p282, %p283
      %p286 = scmp.ne.s32.totalorder %s271, %s285
      %p287 = scmp.eq.s32.totalorder %s30, 0
      %p288 = por %p286, %p287
      %s290 = sadd.s32 %s289, 1
      %p293 = scmp.eq.s32.totalorder %s24, 1
      %p294 = scmp.ne.s32.totalorder %s289, %s291
      %p295 = scmp.eq.s32.totalorder %s24, 0
      %p296 = por %p294, %p295
      %p297 = scmp.ne.s32.totalorder %s289, %s291
      %p298 = scmp.eq.s32.totalorder %s29, 1
      %p299 = por %p297, %p298
      %p300 = scmp.ne.s32.totalorder %s291, %s292
      %p301 = scmp.eq.s32.totalorder %s29, 0
      %p302 = por %p300, %p301
      %p303 = scmp.ne.s32.totalorder %s291, %s292
      %p304 = scmp.eq.s32.totalorder %s30, 1
      %p305 = por %p303, %p304
      %p307 = scmp.ne.s32.totalorder %s292, %s306
      %p308 = scmp.eq.s32.totalorder %s30, 0
      %p309 = por %p307, %p308
      %s310 = ssub.s32 %s24, %s31
      %p311 = scmp.eq.s32.totalorder %s310, 0
      %s313 = sadd.s32 %s312, 1
      %s314 = scalar_select %p311, %s312, %s313
      %p317 = pneg %p311
      %p318 = scmp.eq.s32.totalorder %s24, 1
      %p319 = por %p317, %p318
      %p320 = scmp.ne.s32.totalorder %s312, %s315
      %p321 = scmp.eq.s32.totalorder %s24, 0
      %p322 = por %p320, %p321
      %p323 = scmp.ne.s32.totalorder %s312, %s315
      %p324 = scmp.eq.s32.totalorder %s29, 1
      %p325 = por %p323, %p324
      %p326 = scmp.ne.s32.totalorder %s315, %s316
      %p327 = scmp.eq.s32.totalorder %s29, 0
      %p328 = por %p326, %p327
      %p329 = scmp.ne.s32.totalorder %s315, %s316
      %p330 = scmp.eq.s32.totalorder %s30, 1
      %p331 = por %p329, %p330
      %p333 = scmp.ne.s32.totalorder %s316, %s332
      %p334 = scmp.eq.s32.totalorder %s30, 0
      %p335 = por %p333, %p334
      %p336 = scmp.le.s32.totalorder 1, %s24
      %p337 = scmp.lt.s32.totalorder %s24, 3
      %p338 = pnand %p336, %p337
      %p339 = pneg %p338
      // Predicated region
      $region9: #{tpu_custom_call.1} parent=5 // pred_check
        _
      $region10: #{tpu_custom_call.1} parent=5 // pred_check_branch
        %341 = sbr.rel (%p338) target = $region12
      $region11: #{tpu_custom_call.1} parent=5 // pred_region
        %s342 = ssub.s32 %s24, 1
        // Predicated region
        $region13: #{tpu_custom_call.1} parent=11 // pred_check
          %p343 = pneg %p71
        $region14: #{tpu_custom_call.1} parent=11 // pred_check_branch
          %345 = sbr.rel (%p343) target = $region16
        $region15: #{tpu_custom_call.1} parent=11 // pred_region
          _
        $region16: #{tpu_custom_call.1} parent=11 // pred_fallthru
          _
        // Predicated region
        $region17: #{tpu_custom_call.1} parent=11 // pred_check
          %p346 = pneg %p92
        $region18: #{tpu_custom_call.1} parent=11 // pred_check_branch
          %348 = sbr.rel (%p346) target = $region20
        $region19: #{tpu_custom_call.1} parent=11 // pred_region
          _
        $region20: #{tpu_custom_call.1} parent=11 // pred_fallthru
          _
        // Predicated region
        $region21: #{tpu_custom_call.1} parent=11 // pred_check
          %p349 = pneg %p113
        $region22: #{tpu_custom_call.1} parent=11 // pred_check_branch
          %351 = sbr.rel (%p349) target = $region24
        $region23: #{tpu_custom_call.1} parent=11 // pred_region
          %s353 = ssub.s32 256, 256
          %354 = vsyncadd [#allocation3], %s353
          %s355 = sshll.u32 [#allocation2], 4
          %s356 = int_to_ptr.vmem [resolvable:$true] %s355
          %361 = dma.hbm_to_vmem [thread:$0]  %s3, 256, %s356, [#allocation3], 64, 64, 4
        $region24: #{tpu_custom_call.1} parent=11 // pred_fallthru
          _
        // Predicated region
        $region25: #{tpu_custom_call.1} parent=11 // pred_check
          %p362 = pneg %p134
        $region26: #{tpu_custom_call.1} parent=11 // pred_check_branch
          %364 = sbr.rel (%p362) target = $region28
        $region27: #{tpu_custom_call.1} parent=11 // pred_region
          _
        $region28: #{tpu_custom_call.1} parent=11 // pred_fallthru
          _
        // Predicated region
        $region29: #{tpu_custom_call.1} parent=11 // pred_check
          %p365 = pneg %p155
        $region30: #{tpu_custom_call.1} parent=11 // pred_check_branch
          %367 = sbr.rel (%p365) target = $region32
        $region31: #{tpu_custom_call.1} parent=11 // pred_region
          %s369 = ssub.s32 256, 256
          %370 = vsyncadd [#allocation6], %s369
          %s371 = sshll.u32 [#allocation5], 4
          %s372 = int_to_ptr.vmem [resolvable:$true] %s371
          %377 = dma.hbm_to_vmem [thread:$0]  %s5, 256, %s372, [#allocation6], 64, 64, 4
        $region32: #{tpu_custom_call.1} parent=11 // pred_fallthru
          _
        // Predicated region
        $region33: #{tpu_custom_call.1} parent=11 // pred_check
          %p378 = pneg %p176
        $region34: #{tpu_custom_call.1} parent=11 // pred_check_branch
          %380 = sbr.rel (%p378) target = $region36
        $region35: #{tpu_custom_call.1} parent=11 // pred_region
          _
        $region36: #{tpu_custom_call.1} parent=11 // pred_fallthru
          _
        // Predicated region
        $region37: #{tpu_custom_call.1} parent=11 // pred_check
          %p381 = pneg %p197
        $region38: #{tpu_custom_call.1} parent=11 // pred_check_branch
          %383 = sbr.rel (%p381) target = $region40
        $region39: #{tpu_custom_call.1} parent=11 // pred_region
          _
        $region40: #{tpu_custom_call.1} parent=11 // pred_fallthru
          _
        // Predicated region
        $region41: #{tpu_custom_call.1} parent=11 // pred_check
          %p384 = pneg %p218
        $region42: #{tpu_custom_call.1} parent=11 // pred_check_branch
          %386 = sbr.rel (%p384) target = $region44
        $region43: #{tpu_custom_call.1} parent=11 // pred_region
          _
        $region44: #{tpu_custom_call.1} parent=11 // pred_fallthru
          _
        // Predicated region
        $region45: #{tpu_custom_call.1} parent=11 // pred_check
          %p387 = pneg %p239
        $region46: #{tpu_custom_call.1} parent=11 // pred_check_branch
          %389 = sbr.rel (%p387) target = $region48
        $region47: #{tpu_custom_call.1} parent=11 // pred_region
          _
        $region48: #{tpu_custom_call.1} parent=11 // pred_fallthru
          _
        // Predicated region
        $region49: #{tpu_custom_call.1} parent=11 // pred_check
          %p390 = pneg %p260
        $region50: #{tpu_custom_call.1} parent=11 // pred_check_branch
          %392 = sbr.rel (%p390) target = $region52
        $region51: #{tpu_custom_call.1} parent=11 // pred_region
          _
        $region52: #{tpu_custom_call.1} parent=11 // pred_fallthru
          _
        // Predicated region
        $region53: #{tpu_custom_call.1} parent=11 // pred_check
          %p393 = pneg %p281
        $region54: #{tpu_custom_call.1} parent=11 // pred_check_branch
          %395 = sbr.rel (%p393) target = $region56
        $region55: #{tpu_custom_call.1} parent=11 // pred_region
          _
        $region56: #{tpu_custom_call.1} parent=11 // pred_fallthru
          _
        // Predicated region
        $region57: #{tpu_custom_call.1} parent=11 // pred_check
          %p396 = pneg %p302
        $region58: #{tpu_custom_call.1} parent=11 // pred_check_branch
          %398 = sbr.rel (%p396) target = $region60
        $region59: #{tpu_custom_call.1} parent=11 // pred_region
          _
        $region60: #{tpu_custom_call.1} parent=11 // pred_fallthru
          _
      $region12: #{tpu_custom_call.1} parent=5 // pred_fallthru
        _
      %p399 = scmp.lt.s32.totalorder %s24, 2
      // Predicated region
      $region61: #{tpu_custom_call.1} parent=5 // pred_check
        %p400 = pneg %p399
      $region62: #{tpu_custom_call.1} parent=5 // pred_check_branch
        %402 = sbr.rel (%p400) target = $region64
      $region63: #{tpu_custom_call.1} parent=5 // pred_region
        // Predicated region
        $region65: #{tpu_custom_call.1} parent=63 // pred_check
          %p403 = pneg %p44
        $region66: #{tpu_custom_call.1} parent=63 // pred_check_branch
          %405 = sbr.rel (%p403) target = $region68
        $region67: #{tpu_custom_call.1} parent=63 // pred_region
          %s406 = smul.u32 2, %s24
          %p407 = scmp.lt.s32.totalorder %s406, 3
          %s408 = scalar_select %p407, %s406, 3
          %s409 = smul.addr %s408, 8
          %s410 = scalar_lea.vmem %s0, %s409
          %s411 = smul.u32 2, %s24
        $region68: #{tpu_custom_call.1} parent=63 // pred_fallthru
          _
      $region64: #{tpu_custom_call.1} parent=5 // pred_fallthru
        _
      %p412 = scmp.le.s32.totalorder 1, %s24
      %p413 = scmp.lt.s32.totalorder %s24, 3
      %p414 = pnand %p412, %p413
      %p415 = pneg %p414
      // Predicated region
      $region69: #{tpu_custom_call.1} parent=5 // pred_check
        _
      $region70: #{tpu_custom_call.1} parent=5 // pred_check_branch
        %417 = sbr.rel (%p414) target = $region72
      $region71: #{tpu_custom_call.1} parent=5 // pred_region
        %s418 = ssub.s32 %s24, 1
        // Predicated region
        $region73: #{tpu_custom_call.1} parent=71 // pred_check
          %p419 = pneg %p113
        $region74: #{tpu_custom_call.1} parent=71 // pred_check_branch
          %421 = sbr.rel (%p419) target = $region76
        $region75: #{tpu_custom_call.1} parent=71 // pred_region
          %422 = dma.done [#allocation3], 256
        $region76: #{tpu_custom_call.1} parent=71 // pred_fallthru
          _
        // Predicated region
        $region77: #{tpu_custom_call.1} parent=71 // pred_check
          %p423 = pneg %p155
        $region78: #{tpu_custom_call.1} parent=71 // pred_check_branch
          %425 = sbr.rel (%p423) target = $region80
        $region79: #{tpu_custom_call.1} parent=71 // pred_region
          %426 = dma.done [#allocation6], 256
        $region80: #{tpu_custom_call.1} parent=71 // pred_fallthru
          _
        %s427 = smul.u32 2, %s29
        %p428 = scmp.lt.s32.totalorder %s427, 3
        %s429 = scalar_select %p428, %s427, 3
        %s430 = smul.addr %s429, 8
        %s431 = scalar_lea.vmem %s0, %s430
        %p432 = pneg %p50
        %p433 = pneg %p47
        %p434 = pneg %p71
        %p435 = pneg %p68
        %p436 = pneg %p92
        %p437 = pneg %p89
        %p438 = pneg %p113
        %p439 = pneg %p110
        %p440 = pneg %p134
        %p441 = pneg %p131
        %p442 = pneg %p155
        %p443 = pneg %p152
        %p444 = pneg %p176
        %p445 = pneg %p173
        %p446 = pneg %p197
        %p447 = pneg %p194
        %p448 = pneg %p218
        %p449 = pneg %p215
        %p450 = pneg %p239
        %p451 = pneg %p236
        %p452 = pneg %p260
        %p453 = pneg %p257
        %p454 = pneg %p281
        %p455 = pneg %p278
        %p456 = pneg %p302
        %p457 = pneg %p299
        %p458 = pneg %p328
        %p459 = pneg %p325
        %s460 = sand.u32 %s315, 1
        %s461 = scalar_lea.sflag [#allocation4], %s460
        %s462 = sand.u32 %s315, 1
        %s463 = smul.addr %s462, 16
        %s464 = scalar_lea.vmem [#allocation7], %s463
        %s465 = smul.u32 2, %s29
        %p466 = scmp.lt.s32.totalorder %s465, 3
        %s467 = scalar_select %p466, %s465, 3
        %s468 = smul.addr %s467, 8
        %s469 = scalar_lea.vmem %s0, %s468
        %s470 = smul.u32 2, %s29
        %s471 = smul.u32 2, %s29
        %v473 = vld [vmem:[%s469] sm:$0xff]
        %v474 = vld [vmem:[%s469 + $0x8] sm:$0xff]
        %v475 = vpack.c.bf16 %v474, %v473
        %v476 = vld [vmem:[%s1] sm:$0xf]
        %v477 = vld [vmem:[%s1 + $0x4] sm:$0xf]
        %v478 = vld [vmem:[%s1 + $0x8] sm:$0xf]
        %v479 = vld [vmem:[%s1 + $0xc] sm:$0xf]
        %v480 = vld [vmem:[%s2] sm:$0x1]
        %v482 = vlaneseq
        %v483 = vshrl.u32 %v482, 7
        %v484 = vsub.s32 0, %v483
        %v485 = vrot.slane %v480, %v484
        %v491 = vunpack.c.l.b16 %v476
        %v492 = vunpack.c.l.b16 %v477
        %v493 = vunpack.c.l.b16 %v478
        %v494 = vunpack.c.l.b16 %v479
        %v495 = vpack.c.b16 %v492, %v491
        %v496 = vpack.c.b16 %v494, %v493
        %vm499 = vcmask 261120
        %v501 = vsel %vm499, %v475, 0
        %503 = vmatprep.subr.bf16.mxu0 0
        %504 = vmatpush1.bf16.msra.mxu0 0
        %505 = vmatprep.subr.bf16.mxu0 0
        %506 = vmatpush1.bf16.msra.mxu0 0
        %507 = vmatprep.subr.bf16.mxu0 0
        %508 = vmatpush1.bf16.msra.mxu0 0
        %509 = vmatprep.subr.bf16.mxu0 0
        %510 = vmatpush1.bf16.msra.mxu0 0
        %511 = vmatprep.subr.bf16.mxu0 0
        %512 = vmatpush1.bf16.msra.mxu0 0
        %513 = vmatprep.subr.bf16.mxu0 0
        %514 = vmatpush1.bf16.msra.mxu0 0
        %515 = vmatprep.subr.bf16.mxu0 0
        %516 = vmatpush1.bf16.msra.mxu0 %v496
        %517 = vmatprep.subr.bf16.mxu0 0
        %518 = vmatpush1.bf16.msra.mxu0 %v495
        %519 = vmatprep.subr.bf16.mxu0 0
        %520 = vmatpush2.bf16.msra.mxu0 0
        %521 = vmatprep.subr.bf16.mxu0 0
        %522 = vmatpush2.bf16.msra.mxu0 0
        %523 = vmatprep.subr.bf16.mxu0 0
        %524 = vmatpush2.bf16.msra.mxu0 0
        %525 = vmatprep.subr.bf16.mxu0 0
        %526 = vmatpush2.bf16.msra.mxu0 0
        %527 = vmatprep.subr.bf16.mxu0 0
        %528 = vmatpush2.bf16.msra.mxu0 0
        %529 = vmatprep.subr.bf16.mxu0 0
        %530 = vmatpush2.bf16.msra.mxu0 0
        %531 = vmatprep.subr.bf16.mxu0 0
        %532 = vmatpush2.bf16.msra.mxu0 0
        %533 = vmatprep.subr.bf16.mxu0 0
        %534 = vmatpush2.bf16.msra.mxu0 0
        %535 = vmatprep.mubr.bf16.mxu0 0
        %536 = vmatmul.mubr.bf16.gmra.mxu0 %v501
        %v537 = vpop.f32.mrf.mxu0
        %v538 = vadd.f32 %v485, %v537
        %v539 = vpop.f32.mrf.mxu0
        %v540 = vpop.f32.mrf.mxu0
        %v541 = vadd.f32 %v485, %v540
        %v542 = vpop.f32.mrf.mxu0
        %543 = vdwg.mxu0
        %v544 = vpack.c.bf16 %v538, %v538
        %v545 = vpack.c.bf16 %v541, %v541
        %547 = vrot.lane.b32.xlu0 %v544, 96
        %v548 = vpop.permute.xlu0 %547
        %v550 = vsel %vm499, %v544, 0
        %v553 = vsel %vm499, %v548, 0
        %555 = vmatprep.subr.bf16.mxu0 0
        %556 = vmatpush1.bf16.xpose.msra.mxu0 0
        %557 = vmatprep.subr.bf16.mxu0 0
        %558 = vmatpush1.bf16.xpose.msra.mxu0 0
        %559 = vmatprep.subr.bf16.mxu0 0
        %560 = vmatpush1.bf16.xpose.msra.mxu0 0
        %561 = vmatprep.subr.bf16.mxu0 0
        %562 = vmatpush1.bf16.xpose.msra.mxu0 0
        %563 = vmatprep.subr.bf16.mxu0 0
        %564 = vmatpush1.bf16.xpose.msra.mxu0 0
        %565 = vmatprep.subr.bf16.mxu0 0
        %566 = vmatpush1.bf16.xpose.msra.mxu0 0
        %567 = vmatprep.subr.bf16.mxu0 0
        %568 = vmatpush1.bf16.xpose.msra.mxu0 0
        %569 = vmatprep.subr.bf16.mxu0 0
        %570 = vmatpush1.bf16.xpose.msra.mxu0 %v553
        %571 = vmatprep.subr.bf16.mxu0 0
        %572 = vmatpush2.bf16.xpose.msra.mxu0 0
        %573 = vmatprep.subr.bf16.mxu0 0
        %574 = vmatpush2.bf16.xpose.msra.mxu0 0
        %575 = vmatprep.subr.bf16.mxu0 0
        %576 = vmatpush2.bf16.xpose.msra.mxu0 0
        %577 = vmatprep.subr.bf16.mxu0 0
        %578 = vmatpush2.bf16.xpose.msra.mxu0 0
        %579 = vmatprep.subr.bf16.mxu0 0
        %580 = vmatpush2.bf16.xpose.msra.mxu0 0
        %581 = vmatprep.subr.bf16.mxu0 0
        %582 = vmatpush2.bf16.xpose.msra.mxu0 0
        %583 = vmatprep.subr.bf16.mxu0 0
        %584 = vmatpush2.bf16.xpose.msra.mxu0 0
        %585 = vmatprep.subr.bf16.mxu0 0
        %586 = vmatpush2.bf16.xpose.msra.mxu0 0
        %587 = vmatprep.mubr.bf16.mxu0 0
        %588 = vmatmul.mubr.bf16.gmra.mxu0 %v550
        %v589 = vpop.f32.mrf.mxu0
        %v590 = vadd.f32 0.0, %v589
        %v591 = vpop.f32.mrf.mxu0
        %v592 = vpop.f32.mrf.mxu0
        %v593 = vpop.f32.mrf.mxu0
        %594 = vdwg.mxu0
        %596 = vrot.lane.b32.xlu0 %v545, 96
        %v597 = vpop.permute.xlu0 %596
        %v599 = vsel %vm499, %v545, 0
        %v602 = vsel %vm499, %v597, 0
        %604 = vmatprep.subr.bf16.mxu0 0
        %605 = vmatpush1.bf16.xpose.msra.mxu0 0
        %606 = vmatprep.subr.bf16.mxu0 0
        %607 = vmatpush1.bf16.xpose.msra.mxu0 0
        %608 = vmatprep.subr.bf16.mxu0 0
        %609 = vmatpush1.bf16.xpose.msra.mxu0 0
        %610 = vmatprep.subr.bf16.mxu0 0
        %611 = vmatpush1.bf16.xpose.msra.mxu0 0
        %612 = vmatprep.subr.bf16.mxu0 0
        %613 = vmatpush1.bf16.xpose.msra.mxu0 0
        %614 = vmatprep.subr.bf16.mxu0 0
        %615 = vmatpush1.bf16.xpose.msra.mxu0 0
        %616 = vmatprep.subr.bf16.mxu0 0
        %617 = vmatpush1.bf16.xpose.msra.mxu0 0
        %618 = vmatprep.subr.bf16.mxu0 0
        %619 = vmatpush1.bf16.xpose.msra.mxu0 %v602
        %620 = vmatprep.subr.bf16.mxu0 0
        %621 = vmatpush2.bf16.xpose.msra.mxu0 0
        %622 = vmatprep.subr.bf16.mxu0 0
        %623 = vmatpush2.bf16.xpose.msra.mxu0 0
        %624 = vmatprep.subr.bf16.mxu0 0
        %625 = vmatpush2.bf16.xpose.msra.mxu0 0
        %626 = vmatprep.subr.bf16.mxu0 0
        %627 = vmatpush2.bf16.xpose.msra.mxu0 0
        %628 = vmatprep.subr.bf16.mxu0 0
        %629 = vmatpush2.bf16.xpose.msra.mxu0 0
        %630 = vmatprep.subr.bf16.mxu0 0
        %631 = vmatpush2.bf16.xpose.msra.mxu0 0
        %632 = vmatprep.subr.bf16.mxu0 0
        %633 = vmatpush2.bf16.xpose.msra.mxu0 0
        %634 = vmatprep.subr.bf16.mxu0 0
        %635 = vmatpush2.bf16.xpose.msra.mxu0 0
        %636 = vmatprep.mubr.bf16.mxu0 0
        %637 = vmatmul.mubr.bf16.gmra.mxu0 %v599
        %v638 = vpop.f32.mrf.mxu0
        %v639 = vadd.f32 0.0, %v638
        %v640 = vpop.f32.mrf.mxu0
        %v641 = vpop.f32.mrf.mxu0
        %v642 = vpop.f32.mrf.mxu0
        %643 = vdwg.mxu0
        %v644 = vmul.f32 %v590, 0.17677669
        %v645 = vmul.f32 %v639, 0.17677669
        %vm646 = vcmask 64512
        %v647 = vsel %vm646, %v644, -inf
        %648 = vmax.xlane.f32.xlu0 %v647
        %v649 = vpop.xlane.xlu0 %648
        %v650 = vsel %vm646, %v645, -inf
        %651 = vmax.xlane.f32.xlu0 %v650
        %v652 = vpop.xlane.xlu0 %651
        %v653 = vsub.f32 %v644, %v649
        %v654 = vsub.f32 %v645, %v652
        %v655 = vmul.f32 %v653, 1.442695
        %v656 = vpow.pop %v655
        %v657 = vmul.f32 %v654, 1.442695
        %v658 = vpow.pop %v657
        %v659 = vsel %vm646, %v656, 0.0
        %660 = vadd.xlane.f32.xlu0 %v659
        %v661 = vpop.xlane.xlu0 %660
        %v662 = vsel %vm646, %v658, 0.0
        %663 = vadd.xlane.f32.xlu0 %v662
        %v664 = vpop.xlane.xlu0 %663
        %v665 = vrcp.pop %v661
        %v666 = vrcp.pop %v664
        %v667 = vmul.f32 %v656, %v665
        %v668 = vmul.f32 %v658, %v666
        %v669 = vpack.c.bf16 %v667, %v667
        %v670 = vpack.c.bf16 %v668, %v668
        %671 = vrot.lane.b32.xlu0 %v544, 64
        %v672 = vpop.permute.xlu0 %671
        %v674 = vsel %vm646, %v669, 0
        %vm676 = vcmask 1043456
        %v678 = vsel %vm676, %v672, 0
        %680 = vmatprep.subr.bf16.mxu0 0
        %681 = vmatpush1.bf16.msra.mxu0 0
        %682 = vmatprep.subr.bf16.mxu0 0
        %683 = vmatpush1.bf16.msra.mxu0 0
        %684 = vmatprep.subr.bf16.mxu0 0
        %685 = vmatpush1.bf16.msra.mxu0 0
        %686 = vmatprep.subr.bf16.mxu0 0
        %687 = vmatpush1.bf16.msra.mxu0 0
        %688 = vmatprep.subr.bf16.mxu0 0
        %689 = vmatpush1.bf16.msra.mxu0 0
        %690 = vmatprep.subr.bf16.mxu0 0
        %691 = vmatpush1.bf16.msra.mxu0 0
        %692 = vmatprep.subr.bf16.mxu0 0
        %693 = vmatpush1.bf16.msra.mxu0 0
        %694 = vmatprep.subr.bf16.mxu0 0
        %695 = vmatpush1.bf16.msra.mxu0 %v678
        %696 = vmatprep.subr.bf16.mxu0 0
        %697 = vmatpush2.bf16.msra.mxu0 0
        %698 = vmatprep.subr.bf16.mxu0 0
        %699 = vmatpush2.bf16.msra.mxu0 0
        %700 = vmatprep.subr.bf16.mxu0 0
        %701 = vmatpush2.bf16.msra.mxu0 0
        %702 = vmatprep.subr.bf16.mxu0 0
        %703 = vmatpush2.bf16.msra.mxu0 0
        %704 = vmatprep.subr.bf16.mxu0 0
        %705 = vmatpush2.bf16.msra.mxu0 0
        %706 = vmatprep.subr.bf16.mxu0 0
        %707 = vmatpush2.bf16.msra.mxu0 0
        %708 = vmatprep.subr.bf16.mxu0 0
        %709 = vmatpush2.bf16.msra.mxu0 0
        %710 = vmatprep.subr.bf16.mxu0 0
        %711 = vmatpush2.bf16.msra.mxu0 0
        %712 = vmatprep.mubr.bf16.mxu0 0
        %713 = vmatmul.mubr.bf16.gmra.mxu0 %v674
        %v714 = vpop.f32.mrf.mxu0
        %v715 = vadd.f32 0.0, %v714
        %v716 = vpop.f32.mrf.mxu0
        %v717 = vpop.f32.mrf.mxu0
        %v718 = vpop.f32.mrf.mxu0
        %719 = vdwg.mxu0
        %720 = vrot.lane.b32.xlu0 %v545, 64
        %v721 = vpop.permute.xlu0 %720
        %v723 = vsel %vm646, %v670, 0
        %v726 = vsel %vm676, %v721, 0
        %728 = vmatprep.subr.bf16.mxu0 0
        %729 = vmatpush1.bf16.msra.mxu0 0
        %730 = vmatprep.subr.bf16.mxu0 0
        %731 = vmatpush1.bf16.msra.mxu0 0
        %732 = vmatprep.subr.bf16.mxu0 0
        %733 = vmatpush1.bf16.msra.mxu0 0
        %734 = vmatprep.subr.bf16.mxu0 0
        %735 = vmatpush1.bf16.msra.mxu0 0
        %736 = vmatprep.subr.bf16.mxu0 0
        %737 = vmatpush1.bf16.msra.mxu0 0
        %738 = vmatprep.subr.bf16.mxu0 0
        %739 = vmatpush1.bf16.msra.mxu0 0
        %740 = vmatprep.subr.bf16.mxu0 0
        %741 = vmatpush1.bf16.msra.mxu0 0
        %742 = vmatprep.subr.bf16.mxu0 0
        %743 = vmatpush1.bf16.msra.mxu0 %v726
        %744 = vmatprep.subr.bf16.mxu0 0
        %745 = vmatpush2.bf16.msra.mxu0 0
        %746 = vmatprep.subr.bf16.mxu0 0
        %747 = vmatpush2.bf16.msra.mxu0 0
        %748 = vmatprep.subr.bf16.mxu0 0
        %749 = vmatpush2.bf16.msra.mxu0 0
        %750 = vmatprep.subr.bf16.mxu0 0
        %751 = vmatpush2.bf16.msra.mxu0 0
        %752 = vmatprep.subr.bf16.mxu0 0
        %753 = vmatpush2.bf16.msra.mxu0 0
        %754 = vmatprep.subr.bf16.mxu0 0
        %755 = vmatpush2.bf16.msra.mxu0 0
        %756 = vmatprep.subr.bf16.mxu0 0
        %757 = vmatpush2.bf16.msra.mxu0 0
        %758 = vmatprep.subr.bf16.mxu0 0
        %759 = vmatpush2.bf16.msra.mxu0 0
        %760 = vmatprep.mubr.bf16.mxu0 0
        %761 = vmatmul.mubr.bf16.gmra.mxu0 %v723
        %v762 = vpop.f32.mrf.mxu0
        %v763 = vadd.f32 0.0, %v762
        %v764 = vpop.f32.mrf.mxu0
        %v765 = vpop.f32.mrf.mxu0
        %v766 = vpop.f32.mrf.mxu0
        %767 = vdwg.mxu0
        %v768 = vpack.c.bf16 %v763, %v715
        %v769 = vld [vmem:[#allocation2] sm:$0xf]
        %v770 = vld [vmem:[#allocation2 + $0x4] sm:$0xf]
        %v771 = vld [vmem:[#allocation2 + $0x8] sm:$0xf]
        %v772 = vld [vmem:[#allocation2 + $0xc] sm:$0xf]
        %v773 = vld [vmem:[%s4] sm:$0x1]
        %v775 = vlaneseq
        %v776 = vshrl.u32 %v775, 7
        %v777 = vsub.s32 0, %v776
        %v778 = vrot.slane %v773, %v777
        %v784 = vunpack.c.l.b16 %v769
        %v785 = vunpack.c.l.b16 %v770
        %v786 = vunpack.c.l.b16 %v771
        %v787 = vunpack.c.l.b16 %v772
        %v788 = vpack.c.b16 %v785, %v784
        %v789 = vpack.c.b16 %v787, %v786
        %v793 = vsel %vm499, %v768, 0
        %795 = vmatprep.subr.bf16.mxu0 0
        %796 = vmatpush1.bf16.msra.mxu0 0
        %797 = vmatprep.subr.bf16.mxu0 0
        %798 = vmatpush1.bf16.msra.mxu0 0
        %799 = vmatprep.subr.bf16.mxu0 0
        %800 = vmatpush1.bf16.msra.mxu0 0
        %801 = vmatprep.subr.bf16.mxu0 0
        %802 = vmatpush1.bf16.msra.mxu0 0
        %803 = vmatprep.subr.bf16.mxu0 0
        %804 = vmatpush1.bf16.msra.mxu0 0
        %805 = vmatprep.subr.bf16.mxu0 0
        %806 = vmatpush1.bf16.msra.mxu0 0
        %807 = vmatprep.subr.bf16.mxu0 0
        %808 = vmatpush1.bf16.msra.mxu0 %v789
        %809 = vmatprep.subr.bf16.mxu0 0
        %810 = vmatpush1.bf16.msra.mxu0 %v788
        %811 = vmatprep.subr.bf16.mxu0 0
        %812 = vmatpush2.bf16.msra.mxu0 0
        %813 = vmatprep.subr.bf16.mxu0 0
        %814 = vmatpush2.bf16.msra.mxu0 0
        %815 = vmatprep.subr.bf16.mxu0 0
        %816 = vmatpush2.bf16.msra.mxu0 0
        %817 = vmatprep.subr.bf16.mxu0 0
        %818 = vmatpush2.bf16.msra.mxu0 0
        %819 = vmatprep.subr.bf16.mxu0 0
        %820 = vmatpush2.bf16.msra.mxu0 0
        %821 = vmatprep.subr.bf16.mxu0 0
        %822 = vmatpush2.bf16.msra.mxu0 0
        %823 = vmatprep.subr.bf16.mxu0 0
        %824 = vmatpush2.bf16.msra.mxu0 0
        %825 = vmatprep.subr.bf16.mxu0 0
        %826 = vmatpush2.bf16.msra.mxu0 0
        %827 = vmatprep.mubr.bf16.mxu0 0
        %828 = vmatmul.mubr.bf16.gmra.mxu0 %v793
        %v829 = vpop.f32.mrf.mxu0
        %v830 = vadd.f32 %v778, %v829
        %v831 = vpop.f32.mrf.mxu0
        %v832 = vpop.f32.mrf.mxu0
        %v833 = vadd.f32 %v778, %v832
        %v834 = vpop.f32.mrf.mxu0
        %835 = vdwg.mxu0
        %v836 = vadd.f32 %v473, %v830
        %v837 = vadd.f32 %v474, %v833
        %v838 = vsel %vm499, %v836, 0.0
        %839 = vadd.xlane.f32.xlu0 %v838
        %v840 = vpop.xlane.xlu0 %839
        %v841 = vsel %vm499, %v837, 0.0
        %842 = vadd.xlane.f32.xlu0 %v841
        %v843 = vpop.xlane.xlu0 %842
        %v844 = vrcp.pop 32.0
        %v845 = vmul.f32 %v840, %v844
        %v846 = vmul.f32 %v843, %v844
        %v847 = vsub.f32 %v836, %v845
        %v848 = vsub.f32 %v837, %v846
        %v849 = vmul.f32 %v847, %v847
        %v850 = vmul.f32 %v848, %v848
        %v851 = vsel %vm499, %v849, 0.0
        %852 = vadd.xlane.f32.xlu0 %v851
        %v853 = vpop.xlane.xlu0 %852
        %v854 = vsel %vm499, %v850, 0.0
        %855 = vadd.xlane.f32.xlu0 %v854
        %v856 = vpop.xlane.xlu0 %855
        %v857 = vmul.f32 %v853, %v844
        %v858 = vmul.f32 %v856, %v844
        %v859 = vadd.f32 %v857, 1e-05
        %v860 = vadd.f32 %v858, 1e-05
        %v861 = vrsqrt.pop %v859
        %v862 = vrsqrt.pop %v860
        %v863 = vmul.f32 %v847, %v861
        %v864 = vmul.f32 %v848, %v862
        %v865 = vld [vmem:[%s9] sm:$0x1]
        %v867 = vlaneseq
        %v868 = vshrl.u32 %v867, 7
        %v869 = vsub.s32 0, %v868
        %v870 = vrot.slane %v865, %v869
        %v872 = vmul.f32 %v863, %v870
        %v873 = vmul.f32 %v864, %v870
        %v874 = vld [vmem:[%s10] sm:$0x1]
        %v876 = vlaneseq
        %v877 = vshrl.u32 %v876, 7
        %v878 = vsub.s32 0, %v877
        %v879 = vrot.slane %v874, %v878
        %v881 = vadd.f32 %v872, %v879
        %v882 = vadd.f32 %v873, %v879
        %v883 = vpack.c.bf16 %v882, %v881
        %v884 = vld [vmem:[#allocation5] sm:$0xf]
        %v885 = vld [vmem:[#allocation5 + $0x4] sm:$0xf]
        %v886 = vld [vmem:[#allocation5 + $0x8] sm:$0xf]
        %v887 = vld [vmem:[#allocation5 + $0xc] sm:$0xf]
        %v888 = vld [vmem:[%s6] sm:$0x1]
        %v890 = vlaneseq
        %v891 = vshrl.u32 %v890, 7
        %v892 = vsub.s32 0, %v891
        %v893 = vrot.slane %v888, %v892
        %v899 = vunpack.c.l.b16 %v884
        %v900 = vunpack.c.l.b16 %v885
        %v901 = vunpack.c.l.b16 %v886
        %v902 = vunpack.c.l.b16 %v887
        %v903 = vpack.c.b16 %v900, %v899
        %v904 = vpack.c.b16 %v902, %v901
        %v908 = vsel %vm499, %v883, 0
        %910 = vmatprep.subr.bf16.mxu0 0
        %911 = vmatpush1.bf16.msra.mxu0 0
        %912 = vmatprep.subr.bf16.mxu0 0
        %913 = vmatpush1.bf16.msra.mxu0 0
        %914 = vmatprep.subr.bf16.mxu0 0
        %915 = vmatpush1.bf16.msra.mxu0 0
        %916 = vmatprep.subr.bf16.mxu0 0
        %917 = vmatpush1.bf16.msra.mxu0 0
        %918 = vmatprep.subr.bf16.mxu0 0
        %919 = vmatpush1.bf16.msra.mxu0 0
        %920 = vmatprep.subr.bf16.mxu0 0
        %921 = vmatpush1.bf16.msra.mxu0 0
        %922 = vmatprep.subr.bf16.mxu0 0
        %923 = vmatpush1.bf16.msra.mxu0 %v904
        %924 = vmatprep.subr.bf16.mxu0 0
        %925 = vmatpush1.bf16.msra.mxu0 %v903
        %926 = vmatprep.subr.bf16.mxu0 0
        %927 = vmatpush2.bf16.msra.mxu0 0
        %928 = vmatprep.subr.bf16.mxu0 0
        %929 = vmatpush2.bf16.msra.mxu0 0
        %930 = vmatprep.subr.bf16.mxu0 0
        %931 = vmatpush2.bf16.msra.mxu0 0
        %932 = vmatprep.subr.bf16.mxu0 0
        %933 = vmatpush2.bf16.msra.mxu0 0
        %934 = vmatprep.subr.bf16.mxu0 0
        %935 = vmatpush2.bf16.msra.mxu0 0
        %936 = vmatprep.subr.bf16.mxu0 0
        %937 = vmatpush2.bf16.msra.mxu0 0
        %938 = vmatprep.subr.bf16.mxu0 0
        %939 = vmatpush2.bf16.msra.mxu0 0
        %940 = vmatprep.subr.bf16.mxu0 0
        %941 = vmatpush2.bf16.msra.mxu0 0
        %942 = vmatprep.mubr.bf16.mxu0 0
        %943 = vmatmul.mubr.bf16.gmra.mxu0 %v908
        %v944 = vpop.f32.mrf.mxu0
        %v945 = vadd.f32 %v893, %v944
        %v946 = vpop.f32.mrf.mxu0
        %v947 = vpop.f32.mrf.mxu0
        %v948 = vadd.f32 %v893, %v947
        %v949 = vpop.f32.mrf.mxu0
        %950 = vdwg.mxu0
        %v951 = vmax.f32 %v945, 0.0
        %v952 = vmax.f32 %v948, 0.0
        %v953 = vpack.c.bf16 %v952, %v951
        %v954 = vld [vmem:[%s7] sm:$0xf]
        %v955 = vld [vmem:[%s7 + $0x4] sm:$0xf]
        %v956 = vld [vmem:[%s7 + $0x8] sm:$0xf]
        %v957 = vld [vmem:[%s7 + $0xc] sm:$0xf]
        %v958 = vld [vmem:[%s7 + $0x10] sm:$0xf]
        %v959 = vld [vmem:[%s7 + $0x14] sm:$0xf]
        %v960 = vld [vmem:[%s7 + $0x18] sm:$0xf]
        %v961 = vld [vmem:[%s7 + $0x1c] sm:$0xf]
        %v962 = vld [vmem:[%s8] sm:$0x1]
        %v964 = vlaneseq
        %v965 = vshrl.u32 %v964, 7
        %v966 = vsub.s32 0, %v965
        %v967 = vrot.slane %v962, %v966
        %v977 = vunpack.c.l.b16 %v954
        %v978 = vunpack.c.l.b16 %v955
        %v979 = vunpack.c.l.b16 %v956
        %v980 = vunpack.c.l.b16 %v957
        %v981 = vunpack.c.l.b16 %v958
        %v982 = vunpack.c.l.b16 %v959
        %v983 = vunpack.c.l.b16 %v960
        %v984 = vunpack.c.l.b16 %v961
        %v985 = vpack.c.b16 %v978, %v977
        %v986 = vpack.c.b16 %v980, %v979
        %v987 = vpack.c.b16 %v982, %v981
        %v988 = vpack.c.b16 %v984, %v983
        %vm993 = vcmask 523264
        %v995 = vsel %vm993, %v953, 0
        %997 = vmatprep.subr.bf16.mxu0 0
        %998 = vmatpush1.bf16.msra.mxu0 0
        %999 = vmatprep.subr.bf16.mxu0 0
        %1000 = vmatpush1.bf16.msra.mxu0 0
        %1001 = vmatprep.subr.bf16.mxu0 0
        %1002 = vmatpush1.bf16.msra.mxu0 0
        %1003 = vmatprep.subr.bf16.mxu0 0
        %1004 = vmatpush1.bf16.msra.mxu0 0
        %1005 = vmatprep.subr.bf16.mxu0 0
        %1006 = vmatpush1.bf16.msra.mxu0 %v988
        %1007 = vmatprep.subr.bf16.mxu0 0
        %1008 = vmatpush1.bf16.msra.mxu0 %v987
        %1009 = vmatprep.subr.bf16.mxu0 0
        %1010 = vmatpush1.bf16.msra.mxu0 %v986
        %1011 = vmatprep.subr.bf16.mxu0 0
        %1012 = vmatpush1.bf16.msra.mxu0 %v985
        %1013 = vmatprep.subr.bf16.mxu0 0
        %1014 = vmatpush2.bf16.msra.mxu0 0
        %1015 = vmatprep.subr.bf16.mxu0 0
        %1016 = vmatpush2.bf16.msra.mxu0 0
        %1017 = vmatprep.subr.bf16.mxu0 0
        %1018 = vmatpush2.bf16.msra.mxu0 0
        %1019 = vmatprep.subr.bf16.mxu0 0
        %1020 = vmatpush2.bf16.msra.mxu0 0
        %1021 = vmatprep.subr.bf16.mxu0 0
        %1022 = vmatpush2.bf16.msra.mxu0 0
        %1023 = vmatprep.subr.bf16.mxu0 0
        %1024 = vmatpush2.bf16.msra.mxu0 0
        %1025 = vmatprep.subr.bf16.mxu0 0
        %1026 = vmatpush2.bf16.msra.mxu0 0
        %1027 = vmatprep.subr.bf16.mxu0 0
        %1028 = vmatpush2.bf16.msra.mxu0 0
        %1029 = vmatprep.mubr.bf16.mxu0 0
        %1030 = vmatmul.mubr.bf16.gmra.mxu0 %v995
        %v1031 = vpop.f32.mrf.mxu0
        %v1032 = vadd.f32 %v967, %v1031
        %v1033 = vpop.f32.mrf.mxu0
        %v1034 = vpop.f32.mrf.mxu0
        %v1035 = vadd.f32 %v967, %v1034
        %v1036 = vpop.f32.mrf.mxu0
        %1037 = vdwg.mxu0
        %v1038 = vadd.f32 %v881, %v1032
        %v1039 = vadd.f32 %v882, %v1035
        %v1040 = vsel %vm499, %v1038, 0.0
        %1041 = vadd.xlane.f32.xlu0 %v1040
        %v1042 = vpop.xlane.xlu0 %1041
        %v1043 = vsel %vm499, %v1039, 0.0
        %1044 = vadd.xlane.f32.xlu0 %v1043
        %v1045 = vpop.xlane.xlu0 %1044
        %v1046 = vmul.f32 %v1042, %v844
        %v1047 = vmul.f32 %v1045, %v844
        %v1048 = vsub.f32 %v1038, %v1046
        %v1049 = vsub.f32 %v1039, %v1047
        %v1050 = vmul.f32 %v1048, %v1048
        %v1051 = vmul.f32 %v1049, %v1049
        %v1052 = vsel %vm499, %v1050, 0.0
        %1053 = vadd.xlane.f32.xlu0 %v1052
        %v1054 = vpop.xlane.xlu0 %1053
        %v1055 = vsel %vm499, %v1051, 0.0
        %1056 = vadd.xlane.f32.xlu0 %v1055
        %v1057 = vpop.xlane.xlu0 %1056
        %v1058 = vmul.f32 %v1054, %v844
        %v1059 = vmul.f32 %v1057, %v844
        %v1060 = vadd.f32 %v1058, 1e-05
        %v1061 = vadd.f32 %v1059, 1e-05
        %v1062 = vrsqrt.pop %v1060
        %v1063 = vrsqrt.pop %v1061
        %v1064 = vmul.f32 %v1048, %v1062
        %v1065 = vmul.f32 %v1049, %v1063
        %v1066 = vld [vmem:[%s11] sm:$0x1]
        %v1068 = vlaneseq
        %v1069 = vshrl.u32 %v1068, 7
        %v1070 = vsub.s32 0, %v1069
        %v1071 = vrot.slane %v1066, %v1070
        %v1073 = vmul.f32 %v1064, %v1071
        %v1074 = vmul.f32 %v1065, %v1071
        %v1075 = vld [vmem:[%s12] sm:$0x1]
        %v1077 = vlaneseq
        %v1078 = vshrl.u32 %v1077, 7
        %v1079 = vsub.s32 0, %v1078
        %v1080 = vrot.slane %v1075, %v1079
        %v1082 = vadd.f32 %v1073, %v1080
        %v1083 = vadd.f32 %v1074, %v1080
        %1084 = vst.msk [vmem:[%s464] sm:$0xff] %vm499, %v1082
        %1085 = vst.msk [vmem:[%s464 + $0x8] sm:$0xff] %vm499, %v1083
        %s1086 = sand.u32 %s315, 1
        %s1087 = scalar_lea.sflag [#allocation4], %s1086
        %s1088 = sand.u32 %s315, 1
        %s1089 = smul.addr %s1088, 16
        %s1090 = scalar_lea.vmem [#allocation7], %s1089
        // Predicated region
        $region81: #{tpu_custom_call.1} parent=71 // pred_check
          %p1091 = pneg %p325
        $region82: #{tpu_custom_call.1} parent=71 // pred_check_branch
          %1093 = sbr.rel (%p1091) target = $region84
        $region83: #{tpu_custom_call.1} parent=71 // pred_region
          %s1094 = smul.u32 2, %s29
          %s1096 = ssub.s32 256, 256
          %1097 = vsyncadd %s1087, %s1096
          %s1098 = smul.addr %s1094, 128
          %s1099 = scalar_lea.hbm %s13, %s1098
          %s1100 = sshll.u32 %s1090, 4
          %s1101 = int_to_ptr.vmem [resolvable:$true] %s1100
          %1106 = dma.vmem_to_hbm [thread:$0]  %s1101, 256, %s1099, %s1087, 128, 128, 8
        $region84: #{tpu_custom_call.1} parent=71 // pred_fallthru
          _
      $region72: #{tpu_custom_call.1} parent=5 // pred_fallthru
        _
      %p1107 = scmp.le.s32.totalorder 2, %s24
      // Predicated region
      $region85: #{tpu_custom_call.1} parent=5 // pred_check
        %p1108 = pneg %p1107
      $region86: #{tpu_custom_call.1} parent=5 // pred_check_branch
        %1110 = sbr.rel (%p1108) target = $region88
      $region87: #{tpu_custom_call.1} parent=5 // pred_region
        %s1111 = ssub.s32 %s24, 2
        // Predicated region
        $region89: #{tpu_custom_call.1} parent=87 // pred_check
          %p1112 = pneg %p331
        $region90: #{tpu_custom_call.1} parent=87 // pred_check_branch
          %1114 = sbr.rel (%p1112) target = $region92
        $region91: #{tpu_custom_call.1} parent=87 // pred_region
          %s1115 = sand.u32 %s316, 1
          %s1116 = scalar_lea.sflag [#allocation4], %s1115
          %s1117 = sand.u32 %s316, 1
          %s1118 = smul.addr %s1117, 16
          %s1119 = scalar_lea.vmem [#allocation7], %s1118
          %1120 = dma.done %s1116, 256
        $region92: #{tpu_custom_call.1} parent=87 // pred_fallthru
          _
      $region88: #{tpu_custom_call.1} parent=5 // pred_fallthru
        _
    $region6: #{tpu_custom_call.1} parent=1 // loop_footer
      %s28 = sadd.s32 1, %s24
    $region7: #{tpu_custom_call.1} parent=1 // loop_footer_branch
      %23 = sbr.rel target = $region3
    $region8: #{tpu_custom_call.1} parent=1 // loop_exit
      _
    %1121 = vsyncpa [#allocation3], 1
    %s1122 = scalar_lea.sflag [#allocation3], 1
    %1123 = vsyncpa %s1122, 1
    %1124 = vsyncpa [#allocation6], 1
    %1125 = vsyncpa [#allocation4], 1
    %s1126 = scalar_lea.sflag [#allocation4], 1
    %1127 = vsyncpa %s1126, 1

</llo_original>
